<compile_context>
chip_gen: v5e
topology: v5e:2x2
jax: 0.10.0
libtpu: 0.0.40
codegen_flags: <defaults>
</compile_context>

<pallas_src>
import functools

import jax
import jax.numpy as jnp
from jax.experimental import pallas as pl
from jax.experimental.pallas import tpu as pltpu

LANE = 128   # lane width (last dim)
SUB = 8      # sublane width (second-to-last dim)


def _rup(n, m):
    return ((n + m - 1) // m) * m


# ---------------------------------------------------------------------------
# Pallas kernels
# ---------------------------------------------------------------------------
def _view_chain_kernel(x_ref, e_w_ref, e_b_ref, m_w_ref, m_b_ref,
                       d_w_ref, d_b_ref, h_w_ref, h_b_ref,
                       mu_ref, heads_ref, *, d_out):
    """Fused per-view ZINB autoencoder chain, all intermediates in VMEM.

    heads_ref gets the concatenated [mean | disp | pi] slab (lane-dense,
    padded to a multiple of 128); activations are selected per column.
    """
    f32 = jnp.float32
    h_enc = jnp.maximum(
        jnp.dot(x_ref[...], e_w_ref[...], preferred_element_type=f32)
        + e_b_ref[...], 0.0)
    mu = jnp.dot(h_enc, m_w_ref[...], preferred_element_type=f32) + m_b_ref[...]
    mu_ref[...] = mu
    h_dec = jnp.maximum(
        jnp.dot(mu, d_w_ref[...], preferred_element_type=f32) + d_b_ref[...], 0.0)
    y = jnp.dot(h_dec, h_w_ref[...], preferred_element_type=f32) + h_b_ref[...]

    col = jax.lax.broadcasted_iota(jnp.int32, y.shape, 1)
    mean = jnp.clip(jnp.exp(y), 1e-5, 1e6)            # MeanAct
    disp = jnp.clip(jax.nn.softplus(y), 1e-4, 1e4)    # DispAct
    pi = jax.nn.sigmoid(y)                            # dropout prob
    heads_ref[...] = jnp.where(col < d_out, mean,
                               jnp.where(col < 2 * d_out, disp, pi))


def _fusion_ddc_kernel(*refs, num_views, n_clusters):
    """fused = sum_v w[v]*mu[v]; hidden = relu(fused@W1+b1);
    soft = softmax(hidden@W2+b2) with padded cluster columns masked out."""
    f32 = jnp.float32
    w_ref = refs[0]                                   # (V,) in SMEM
    mu_refs = refs[1:1 + num_views]
    d1w, d1b, d2w, d2b = refs[1 + num_views:1 + num_views + 4]
    fused_ref, hidden_ref, soft_ref = refs[1 + num_views + 4:]

    fused = w_ref[0] * mu_refs[0][...]
    for v in range(1, num_views):                     # static unroll over views
        fused = fused + w_ref[v] * mu_refs[v][...]
    fused_ref[...] = fused

    hidden = jnp.maximum(
        jnp.dot(fused, d1w[...], preferred_element_type=f32) + d1b[...], 0.0)
    # TODO(synk): original DDC applies BatchNorm1d after the hidden ReLU; omitted.
    hidden_ref[...] = hidden

    logits = jnp.dot(hidden, d2w[...], preferred_element_type=f32) + d2b[...]
    col = jax.lax.broadcasted_iota(jnp.int32, logits.shape, 1)
    logits = jnp.where(col < n_clusters, logits, -1e30)   # pad lanes -> ~-inf
    soft_ref[...] = jax.nn.softmax(logits, axis=-1)


# ---------------------------------------------------------------------------
# Kernel wrappers
# ---------------------------------------------------------------------------
def _view_chain(x_pad, v, d_out, batch_tile, dims):
    Bp, Dp = x_pad.shape
    Ep, Lp, Hp = dims["enc"], dims["lat"], dims["dec"]
    H3p = v["heads_w"].shape[1]
    grid = (Bp // batch_tile,)
    return pl.pallas_call(
        functools.partial(_view_chain_kernel, d_out=d_out),
        out_shape=(jax.ShapeDtypeStruct((Bp, Lp), jnp.float32),
                   jax.ShapeDtypeStruct((Bp, H3p), jnp.float32)),
        grid=grid,
        in_specs=[
            pl.BlockSpec((batch_tile, Dp), lambda i: (i, 0)),
            pl.BlockSpec((Dp, Ep), lambda i: (0, 0)),
            pl.BlockSpec((1, Ep), lambda i: (0, 0)),
            pl.BlockSpec((Ep, Lp), lambda i: (0, 0)),
            pl.BlockSpec((1, Lp), lambda i: (0, 0)),
            pl.BlockSpec((Lp, Hp), lambda i: (0, 0)),
            pl.BlockSpec((1, Hp), lambda i: (0, 0)),
            pl.BlockSpec((Hp, H3p), lambda i: (0, 0)),
            pl.BlockSpec((1, H3p), lambda i: (0, 0)),
        ],
        out_specs=(pl.BlockSpec((batch_tile, Lp), lambda i: (i, 0)),
                   pl.BlockSpec((batch_tile, H3p), lambda i: (i, 0))),
        compiler_params=pltpu.CompilerParams(dimension_semantics=("parallel",)),
    )(x_pad, v["enc1_w"], v["enc1_b"], v["mu_w"], v["mu_b"],
      v["dec1_w"], v["dec1_b"], v["heads_w"], v["heads_b"])


def _fusion_ddc(mu_pads, w_soft, params, dims, n_clusters, batch_tile):
    V = len(mu_pads)
    Bp, Lp = mu_pads[0].shape
    Hp, Cp = dims["ddc"], dims["clu"]
    grid = (Bp // batch_tile,)
    mu_spec = pl.BlockSpec((batch_tile, Lp), lambda i: (i, 0))
    return pl.pallas_call(
        functools.partial(_fusion_ddc_kernel, num_views=V, n_clusters=n_clusters),
        out_shape=(jax.ShapeDtypeStruct((Bp, Lp), jnp.float32),
                   jax.ShapeDtypeStruct((Bp, Hp), jnp.float32),
                   jax.ShapeDtypeStruct((Bp, Cp), jnp.float32)),
        grid=grid,
        in_specs=[pl.BlockSpec(memory_space=pltpu.MemorySpace.SMEM)]   # (V,) weights
                 + [mu_spec] * V
                 + [pl.BlockSpec((Lp, Hp), lambda i: (0, 0)),
                    pl.BlockSpec((1, Hp), lambda i: (0, 0)),
                    pl.BlockSpec((Hp, Cp), lambda i: (0, 0)),
                    pl.BlockSpec((1, Cp), lambda i: (0, 0))],
        out_specs=(mu_spec,
                   pl.BlockSpec((batch_tile, Hp), lambda i: (i, 0)),
                   pl.BlockSpec((batch_tile, Cp), lambda i: (i, 0))),
        compiler_params=pltpu.CompilerParams(dimension_semantics=("parallel",)),
    )(w_soft, *mu_pads, params["ddc1_w"], params["ddc1_b"],
      params["ddc2_w"], params["ddc2_b"])


# ---------------------------------------------------------------------------
# Parameter init (matches he_init_weights: kaiming_normal_ on Linear weights,
# zero bias).  Weights are stored pre-padded to lane-dense (x128) shapes.
# ---------------------------------------------------------------------------
def _kaiming_w(key, din, dout):
    std = (2.0 / din) ** 0.5                 # fan_in mode, gain sqrt(2)
    w_pt = std * jax.random.normal(key, (dout, din), jnp.float32)
    return w_pt.T                            # (din, dout)


def _pad2(w, rows, cols):
    out = jnp.zeros((rows, cols), jnp.float32)
    return out.at[:w.shape[0], :w.shape[1]].set(w)


def init_params(key, view_dims, enc_hidden, latent, dec_hidden, ddc_hidden,
                n_clusters):
    dims = {
        "enc": _rup(enc_hidden, LANE), "lat": _rup(latent, LANE),
        "dec": _rup(dec_hidden, LANE), "ddc": _rup(ddc_hidden, LANE),
        "clu": _rup(n_clusters, LANE),
        "views": [_rup(d, LANE) for d in view_dims],
        "heads": [_rup(3 * d, LANE) for d in view_dims],
    }
    params = {"views": []}
    for d, dp, hp in zip(view_dims, dims["views"], dims["heads"]):
        key, k0, k1, k2, k3, k4, k5 = jax.random.split(key, 7)
        heads_w = jnp.concatenate(                    # [mean | disp | pi]
            [_kaiming_w(k3, dec_hidden, d),
             _kaiming_w(k4, dec_hidden, d),
             _kaiming_w(k5, dec_hidden, d)], axis=1)
        params["views"].append({
            "enc1_w": _pad2(_kaiming_w(k0, d, enc_hidden), dp, dims["enc"]),
            "enc1_b": jnp.zeros((1, dims["enc"]), jnp.float32),
            "mu_w": _pad2(_kaiming_w(k1, enc_hidden, latent), dims["enc"], dims["lat"]),
            "mu_b": jnp.zeros((1, dims["lat"]), jnp.float32),
            "dec1_w": _pad2(_kaiming_w(k2, latent, dec_hidden), dims["lat"], dims["dec"]),
            "dec1_b": jnp.zeros((1, dims["dec"]), jnp.float32),
            "heads_w": _pad2(heads_w, dims["dec"], hp),
            "heads_b": jnp.zeros((1, hp), jnp.float32),
        })
    key, k1, k2 = jax.random.split(key, 3)
    params["fusion_w"] = jnp.zeros((len(view_dims),), jnp.float32)  # softmax->uniform
    params["ddc1_w"] = _pad2(_kaiming_w(k1, latent, ddc_hidden), dims["lat"], dims["ddc"])
    params["ddc1_b"] = jnp.zeros((1, dims["ddc"]), jnp.float32)
    params["ddc2_w"] = _pad2(_kaiming_w(k2, ddc_hidden, n_clusters), dims["ddc"], dims["clu"])
    params["ddc2_b"] = jnp.zeros((1, dims["clu"]), jnp.float32)
    return params, dims


# ---------------------------------------------------------------------------
# scMVC_simple.forward
# ---------------------------------------------------------------------------
def scmvc_simple_forward(params, dims, cfg, mv_input):
    B = mv_input[0].shape[0]
    Bp = _rup(B, SUB)
    if Bp > 128:
        Bp = _rup(Bp, 128)
    batch_tile = min(Bp, 128)

    mus_pad, mus, means, disps, pis = [], [], [], [], []
    for x, v, d, dp in zip(mv_input, params["views"], cfg["view_dims"],
                           dims["views"]):
        x_pad = jnp.zeros((Bp, dp), jnp.float32).at[:B, :d].set(x)
        mu_pad, heads_pad = _view_chain(x_pad, v, d, batch_tile, dims)
        mus_pad.append(mu_pad)                          # keep padded for fusion
        mus.append(mu_pad[:B, :cfg["latent"]])
        means.append(heads_pad[:B, 0:d])
        disps.append(heads_pad[:B, d:2 * d])
        pis.append(heads_pad[:B, 2 * d:3 * d])

    # weighted-mean fusion weights (softmax over learned logits -> uniform here)
    w_soft = jax.nn.softmax(params["fusion_w"])
    fused_pad, hidden_pad, soft_pad = _fusion_ddc(
        mus_pad, w_soft, params, dims, cfg["n_clusters"], batch_tile)

    fused = fused_pad[:B, :cfg["latent"]]
    hidden = hidden_pad[:B, :cfg["ddc_hidden"]]
    output_soft_label = soft_pad[:B, :cfg["n_clusters"]]

    # self.output = [soft_label, mu, mean, disp, pi]
    return [output_soft_label, mus, means, disps, pis], hidden, fused


if __name__ == "__main__":
    key = jax.random.PRNGKey(0)

    # Small synthetic multi-view input: 2 views, batch=8, dims 32 and 16.
    batch = 8
    view_dims = (32, 16)
    enc_hidden, latent, dec_hidden = 32, 16, 32
    ddc_hidden, n_clusters = 32, 4
    cfg = {"view_dims": view_dims, "latent": latent,
           "ddc_hidden": ddc_hidden, "n_clusters": n_clusters}

    key, kp, kx0, kx1 = jax.random.split(key, 4)
    params, dims = init_params(kp, view_dims, enc_hidden, latent, dec_hidden,
                               ddc_hidden, n_clusters)
    mv_input = [
        jax.random.normal(kx0, (batch, view_dims[0]), jnp.float32),
        jax.random.normal(kx1, (batch, view_dims[1]), jnp.float32),
    ]

    output, hidden, fused = scmvc_simple_forward(params, dims, cfg, mv_input)
    jax.block_until_ready((output, hidden, fused))

    soft_label = output[0]
    assert soft_label.shape == (batch, n_clusters)
    assert output[1][0].shape == (batch, latent)
    assert output[2][0].shape == (batch, view_dims[0])
    assert output[3][1].shape == (batch, view_dims[1])
    assert output[4][0].shape == (batch, view_dims[0])
    assert hidden.shape == (batch, ddc_hidden)
    assert fused.shape == (batch, latent)
    # soft labels are a valid distribution
    assert jnp.allclose(jnp.sum(soft_label, axis=-1), 1.0, atol=1e-5)
    # ZINB head ranges
    assert bool(jnp.all(output[2][0] >= 1e-5)) and bool(jnp.all(output[2][0] <= 1e6))
    assert bool(jnp.all(output[3][0] >= 1e-4)) and bool(jnp.all(output[3][0] <= 1e4))
    assert bool(jnp.all(output[4][0] >= 0.0)) and bool(jnp.all(output[4][0] <= 1.0))

    print("KERNEL_OK")
</pallas_src>

<mosaic_0001>
module attributes {stable_mosaic.version = 11 : i64} {
  func.func @_view_chain_kernel(%arg0: i32, %arg1: memref<8x128xf32, #tpu.memory_space<vmem>>, %arg2: memref<128x128xf32, #tpu.memory_space<vmem>>, %arg3: memref<1x128xf32, #tpu.memory_space<vmem>>, %arg4: memref<128x128xf32, #tpu.memory_space<vmem>>, %arg5: memref<1x128xf32, #tpu.memory_space<vmem>>, %arg6: memref<128x128xf32, #tpu.memory_space<vmem>>, %arg7: memref<1x128xf32, #tpu.memory_space<vmem>>, %arg8: memref<128x128xf32, #tpu.memory_space<vmem>>, %arg9: memref<1x128xf32, #tpu.memory_space<vmem>>, %arg10: memref<8x128xf32, #tpu.memory_space<vmem>>, %arg11: memref<8x128xf32, #tpu.memory_space<vmem>>) attributes {dimension_semantics = [#tpu.dimension_semantics<parallel>], iteration_bounds = array<i64: 1>, scalar_prefetch = 0 : i64, scratch_operands = 0 : i64, tpu.core_type = #tpu.core_type<tc>, window_params = [{transform_indices = @transform_0, window_bounds = array<i64: 8, 128>}, {pipeline_mode = #tpu.pipeline_mode<synchronous>, transform_indices = @transform_1, window_bounds = array<i64: 128, 128>}, {pipeline_mode = #tpu.pipeline_mode<synchronous>, transform_indices = @transform_2, window_bounds = array<i64: 1, 128>}, {pipeline_mode = #tpu.pipeline_mode<synchronous>, transform_indices = @transform_3, window_bounds = array<i64: 128, 128>}, {pipeline_mode = #tpu.pipeline_mode<synchronous>, transform_indices = @transform_4, window_bounds = array<i64: 1, 128>}, {pipeline_mode = #tpu.pipeline_mode<synchronous>, transform_indices = @transform_5, window_bounds = array<i64: 128, 128>}, {pipeline_mode = #tpu.pipeline_mode<synchronous>, transform_indices = @transform_6, window_bounds = array<i64: 1, 128>}, {pipeline_mode = #tpu.pipeline_mode<synchronous>, transform_indices = @transform_7, window_bounds = array<i64: 128, 128>}, {pipeline_mode = #tpu.pipeline_mode<synchronous>, transform_indices = @transform_8, window_bounds = array<i64: 1, 128>}, {transform_indices = @transform_9, window_bounds = array<i64: 8, 128>}, {transform_indices = @transform_10, window_bounds = array<i64: 8, 128>}]} {
    %c0 = arith.constant 0 : index
    %c0_0 = arith.constant 0 : index
    %0 = vector.load %arg1[%c0, %c0_0] : memref<8x128xf32, #tpu.memory_space<vmem>>, vector<8x128xf32>
    %c0_1 = arith.constant 0 : index
    %c0_2 = arith.constant 0 : index
    %1 = vector.load %arg2[%c0_1, %c0_2] : memref<128x128xf32, #tpu.memory_space<vmem>>, vector<128x128xf32>
    %cst = arith.constant dense<0.000000e+00> : vector<8x128xf32>
    %2 = tpu.matmul %0, %1, %cst {dimension_numbers = #tpu.dot_dimension_numbers<[1], [0], [0], [1], [0, 0, 1, 1], [], []>} : vector<8x128xf32>, vector<128x128xf32>, vector<8x128xf32> -> vector<8x128xf32>
    %c0_3 = arith.constant 0 : index
    %c0_4 = arith.constant 0 : index
    %3 = vector.load %arg3[%c0_3, %c0_4] : memref<1x128xf32, #tpu.memory_space<vmem>>, vector<1x128xf32>
    %4 = vector.broadcast %3 : vector<1x128xf32> to vector<8x128xf32>
    %5 = arith.addf %2, %4 : vector<8x128xf32>
    %cst_5 = arith.constant 0.000000e+00 : f32
    %6 = vector.broadcast %cst_5 : f32 to vector<8x128xf32>
    %7 = arith.maximumf %5, %6 : vector<8x128xf32>
    %c0_6 = arith.constant 0 : index
    %c0_7 = arith.constant 0 : index
    %8 = vector.load %arg4[%c0_6, %c0_7] : memref<128x128xf32, #tpu.memory_space<vmem>>, vector<128x128xf32>
    %cst_8 = arith.constant dense<0.000000e+00> : vector<8x128xf32>
    %9 = tpu.matmul %7, %8, %cst_8 {dimension_numbers = #tpu.dot_dimension_numbers<[1], [0], [0], [1], [0, 0, 1, 1], [], []>} : vector<8x128xf32>, vector<128x128xf32>, vector<8x128xf32> -> vector<8x128xf32>
    %c0_9 = arith.constant 0 : index
    %c0_10 = arith.constant 0 : index
    %10 = vector.load %arg5[%c0_9, %c0_10] : memref<1x128xf32, #tpu.memory_space<vmem>>, vector<1x128xf32>
    %11 = vector.broadcast %10 : vector<1x128xf32> to vector<8x128xf32>
    %12 = arith.addf %9, %11 : vector<8x128xf32>
    %c0_11 = arith.constant 0 : index
    %c0_12 = arith.constant 0 : index
    %13 = vector.load %arg10[%c0_11, %c0_12] : memref<8x128xf32, #tpu.memory_space<vmem>>, vector<8x128xf32>
    tpu.vector_store %arg10[%c0_11, %c0_12], %12 {strides = array<i32>} : memref<8x128xf32, #tpu.memory_space<vmem>>, vector<8x128xf32>,
    %c0_13 = arith.constant 0 : index
    %c0_14 = arith.constant 0 : index
    %14 = vector.load %arg6[%c0_13, %c0_14] : memref<128x128xf32, #tpu.memory_space<vmem>>, vector<128x128xf32>
    %cst_15 = arith.constant dense<0.000000e+00> : vector<8x128xf32>
    %15 = tpu.matmul %12, %14, %cst_15 {dimension_numbers = #tpu.dot_dimension_numbers<[1], [0], [0], [1], [0, 0, 1, 1], [], []>} : vector<8x128xf32>, vector<128x128xf32>, vector<8x128xf32> -> vector<8x128xf32>
    %c0_16 = arith.constant 0 : index
    %c0_17 = arith.constant 0 : index
    %16 = vector.load %arg7[%c0_16, %c0_17] : memref<1x128xf32, #tpu.memory_space<vmem>>, vector<1x128xf32>
    %17 = vector.broadcast %16 : vector<1x128xf32> to vector<8x128xf32>
    %18 = arith.addf %15, %17 : vector<8x128xf32>
    %cst_18 = arith.constant 0.000000e+00 : f32
    %19 = vector.broadcast %cst_18 : f32 to vector<8x128xf32>
    %20 = arith.maximumf %18, %19 : vector<8x128xf32>
    %c0_19 = arith.constant 0 : index
    %c0_20 = arith.constant 0 : index
    %21 = vector.load %arg8[%c0_19, %c0_20] : memref<128x128xf32, #tpu.memory_space<vmem>>, vector<128x128xf32>
    %cst_21 = arith.constant dense<0.000000e+00> : vector<8x128xf32>
    %22 = tpu.matmul %20, %21, %cst_21 {dimension_numbers = #tpu.dot_dimension_numbers<[1], [0], [0], [1], [0, 0, 1, 1], [], []>} : vector<8x128xf32>, vector<128x128xf32>, vector<8x128xf32> -> vector<8x128xf32>
    %c0_22 = arith.constant 0 : index
    %c0_23 = arith.constant 0 : index
    %23 = vector.load %arg9[%c0_22, %c0_23] : memref<1x128xf32, #tpu.memory_space<vmem>>, vector<1x128xf32>
    %24 = vector.broadcast %23 : vector<1x128xf32> to vector<8x128xf32>
    %25 = arith.addf %22, %24 : vector<8x128xf32>
    %26 = tpu.iota {dimensions = array<i32: 1>} : vector<8x128xi32>
    %27 = math.exp %25 : vector<8x128xf32>
    %cst_24 = arith.constant 9.99999974E-6 : f32
    %cst_25 = arith.constant 1.000000e+06 : f32
    %28 = vector.broadcast %cst_24 : f32 to vector<8x128xf32>
    %29 = arith.maximumf %28, %27 : vector<8x128xf32>
    %30 = vector.broadcast %cst_25 : f32 to vector<8x128xf32>
    %31 = arith.minimumf %30, %29 : vector<8x128xf32>
    %cst_26 = arith.constant 0.000000e+00 : f32
    %32 = vector.broadcast %cst_26 : f32 to vector<8x128xf32>
    %33 = arith.maximumf %25, %32 : vector<8x128xf32>
    %34 = vector.broadcast %cst_26 : f32 to vector<8x128xf32>
    %35 = arith.subf %25, %34 : vector<8x128xf32>
    %36 = arith.cmpf one, %35, %35 : vector<8x128xf32>
    %37 = vector.broadcast %cst_26 : f32 to vector<8x128xf32>
    %38 = arith.addf %25, %37 : vector<8x128xf32>
    %39 = math.absf %35 : vector<8x128xf32>
    %cst_27 = arith.constant 0.000000e+00 : f32
    %40 = vector.broadcast %cst_27 : f32 to vector<8x128xf32>
    %41 = arith.subf %40, %39 : vector<8x128xf32>
    %42 = math.exp %41 : vector<8x128xf32>
    %43 = math.log1p %42 : vector<8x128xf32>
    %44 = arith.addf %33, %43 : vector<8x128xf32>
    %45 = arith.select %36, %38, %44 : vector<8x128xi1>, vector<8x128xf32>
    %cst_28 = arith.constant 9.99999974E-5 : f32
    %cst_29 = arith.constant 1.000000e+04 : f32
    %46 = vector.broadcast %cst_28 : f32 to vector<8x128xf32>
    %47 = arith.maximumf %46, %45 : vector<8x128xf32>
    %48 = vector.broadcast %cst_29 : f32 to vector<8x128xf32>
    %49 = arith.minimumf %48, %47 : vector<8x128xf32>
    %50 = arith.negf %25 : vector<8x128xf32>
    %51 = math.exp %50 : vector<8x128xf32>
    %cst_30 = arith.constant 1.000000e+00 : f32
    %52 = vector.broadcast %cst_30 : f32 to vector<8x128xf32>
    %53 = arith.addf %52, %51 : vector<8x128xf32>
    %54 = arith.divf %52, %53 : vector<8x128xf32>
    %c32_i32 = arith.constant 32 : i32
    %55 = vector.broadcast %c32_i32 : i32 to vector<8x128xi32>
    %56 = arith.cmpi slt, %26, %55 : vector<8x128xi32>
    %c64_i32 = arith.constant 64 : i32
    %57 = vector.broadcast %c64_i32 : i32 to vector<8x128xi32>
    %58 = arith.cmpi slt, %26, %57 : vector<8x128xi32>
    %59 = arith.select %58, %49, %54 : vector<8x128xi1>, vector<8x128xf32>
    %60 = arith.select %56, %31, %59 : vector<8x128xi1>, vector<8x128xf32>
    %c0_31 = arith.constant 0 : index
    %c0_32 = arith.constant 0 : index
    %61 = vector.load %arg11[%c0_31, %c0_32] : memref<8x128xf32, #tpu.memory_space<vmem>>, vector<8x128xf32>
    tpu.vector_store %arg11[%c0_31, %c0_32], %60 {strides = array<i32>} : memref<8x128xf32, #tpu.memory_space<vmem>>, vector<8x128xf32>,
    return
  }
  func.func @transform_0(%arg0: i32) -> (i32, i32) {
    %c0_i32 = arith.constant 0 : i32
    %c0_i32_0 = arith.constant 0 : i32
    return %arg0, %c0_i32 : i32, i32
  }
  func.func @transform_1(%arg0: i32) -> (i32, i32) {
    %c0_i32 = arith.constant 0 : i32
    %c0_i32_0 = arith.constant 0 : i32
    %c0_i32_1 = arith.constant 0 : i32
    return %c0_i32, %c0_i32_0 : i32, i32
  }
  func.func @transform_2(%arg0: i32) -> (i32, i32) {
    %c0_i32 = arith.constant 0 : i32
    %c0_i32_0 = arith.constant 0 : i32
    %c0_i32_1 = arith.constant 0 : i32
    return %c0_i32, %c0_i32_0 : i32, i32
  }
  func.func @transform_3(%arg0: i32) -> (i32, i32) {
    %c0_i32 = arith.constant 0 : i32
    %c0_i32_0 = arith.constant 0 : i32
    %c0_i32_1 = arith.constant 0 : i32
    return %c0_i32, %c0_i32_0 : i32, i32
  }
  func.func @transform_4(%arg0: i32) -> (i32, i32) {
    %c0_i32 = arith.constant 0 : i32
    %c0_i32_0 = arith.constant 0 : i32
    %c0_i32_1 = arith.constant 0 : i32
    return %c0_i32, %c0_i32_0 : i32, i32
  }
  func.func @transform_5(%arg0: i32) -> (i32, i32) {
    %c0_i32 = arith.constant 0 : i32
    %c0_i32_0 = arith.constant 0 : i32
    %c0_i32_1 = arith.constant 0 : i32
    return %c0_i32, %c0_i32_0 : i32, i32
  }
  func.func @transform_6(%arg0: i32) -> (i32, i32) {
    %c0_i32 = arith.constant 0 : i32
    %c0_i32_0 = arith.constant 0 : i32
    %c0_i32_1 = arith.constant 0 : i32
    return %c0_i32, %c0_i32_0 : i32, i32
  }
  func.func @transform_7(%arg0: i32) -> (i32, i32) {
    %c0_i32 = arith.constant 0 : i32
    %c0_i32_0 = arith.constant 0 : i32
    %c0_i32_1 = arith.constant 0 : i32
    return %c0_i32, %c0_i32_0 : i32, i32
  }
  func.func @transform_8(%arg0: i32) -> (i32, i32) {
    %c0_i32 = arith.constant 0 : i32
    %c0_i32_0 = arith.constant 0 : i32
    %c0_i32_1 = arith.constant 0 : i32
    return %c0_i32, %c0_i32_0 : i32, i32
  }
  func.func @transform_9(%arg0: i32) -> (i32, i32) {
    %c0_i32 = arith.constant 0 : i32
    %c0_i32_0 = arith.constant 0 : i32
    return %arg0, %c0_i32 : i32, i32
  }
  func.func @transform_10(%arg0: i32) -> (i32, i32) {
    %c0_i32 = arith.constant 0 : i32
    %c0_i32_0 = arith.constant 0 : i32
    return %arg0, %c0_i32 : i32, i32
  }
}

</mosaic_0001>

<llo_original>
// kernel: tpu_custom_call.1
$region0: #{tpu_custom_call.1}
  #allocation0 [shape = 'u32[]', space=smem, size = 0x4, offset = 0x4, fixed_abs, tag = 'smem constant byte address 0x4 - core index']
  #allocation1 [shape = 'u32[72,128]{1,0:T(1,128)}', space=vmem, size = 0x9000, scoped, tag = 'internal scratch']
  %s0 = inlined_call_operand.hbm [shape: f32[8,128], index: 0, kind: input, shape index: {}]
  %s1 = inlined_call_operand.hbm [shape: f32[128,128], index: 1, kind: input, shape index: {}]
  %s2 = inlined_call_operand.vmem [shape: f32[1,128], index: 2, kind: input, shape index: {}]
  %s3 = inlined_call_operand.hbm [shape: f32[128,128], index: 3, kind: input, shape index: {}]
  %s4 = inlined_call_operand.vmem [shape: f32[1,128], index: 4, kind: input, shape index: {}]
  %s5 = inlined_call_operand.hbm [shape: f32[128,128], index: 5, kind: input, shape index: {}]
  %s6 = inlined_call_operand.vmem [shape: f32[1,128], index: 6, kind: input, shape index: {}]
  %s7 = inlined_call_operand.hbm [shape: f32[128,128], index: 7, kind: input, shape index: {}]
  %s8 = inlined_call_operand.vmem [shape: f32[1,128], index: 8, kind: input, shape index: {}]
  %s9 = inlined_call_operand.hbm [shape: f32[8,128], index: 9, kind: output, shape index: {0}]
  %s10 = inlined_call_operand.hbm [shape: f32[8,128], index: 10, kind: output, shape index: {1}]
  %11 = xla_tuple %s9, %s10
  %s12 = sld [smem:[#allocation0]]
  $region74: #{tpu_custom_call.1} parent=0
    _
  %s14 = ssub.s32 1, %s12
  %s15 = scalar_select 0, %s14, %s12
  $region1: #{tpu_custom_call.1} parent=0
    #allocation2 [shape = 'u8[4096]{0}', space=vmem, size = 0x1000, scoped, tag = 'input window, operand 0, single buffered']
    #allocation3 [shape = 's32[1]{0}', space=sflag, size = 0x4, scoped, tag = 'scoped memory for tpu_custom_call.1']
    #allocation4 [shape = 's32[1]{0}', space=sflag, size = 0x4, scoped, tag = 'scoped memory for tpu_custom_call.1']
    #allocation5 [shape = 'u8[65536]{0}', space=vmem, size = 0x10000, scoped, tag = 'input window, operand 1, single buffered']
    #allocation6 [shape = 's32[1]{0}', space=sflag, size = 0x4, scoped, tag = 'scoped memory for tpu_custom_call.1']
    #allocation7 [shape = 'u8[65536]{0}', space=vmem, size = 0x10000, scoped, tag = 'input window, operand 3, single buffered']
    #allocation8 [shape = 'u8[65536]{0}', space=vmem, size = 0x10000, scoped, tag = 'input window, operand 5, single buffered']
    #allocation9 [shape = 's32[1]{0}', space=sflag, size = 0x4, scoped, tag = 'scoped memory for tpu_custom_call.1']
    #allocation10 [shape = 'u8[65536]{0}', space=vmem, size = 0x10000, scoped, tag = 'input window, operand 7, single buffered']
    #allocation11 [shape = 'u8[4096]{0}', space=vmem, size = 0x1000, scoped, tag = 'output window, operand 0, single buffered']
    #allocation12 [shape = 'u8[4096]{0}', space=vmem, size = 0x1000, scoped, tag = 'output window, operand 1, single buffered']
    #allocation13 [shape = 's32[1]{0}', space=sflag, size = 0x4, scoped, tag = 'scoped memory for tpu_custom_call.1']
    %16 = vsyncpa [#allocation3], 0
    %17 = vsyncpa [#allocation6], 0
    %18 = vsyncpa [#allocation9], 0
    %19 = vsyncpa [#allocation4], 0
    %20 = vsyncpa [#allocation13], 0
    // Predicated region
    $region2: #{tpu_custom_call.1} parent=1 // pred_check
      _
    $region3: #{tpu_custom_call.1} parent=1 // pred_check_branch
      %22 = sbr.rel (0) target = $region5
    $region4: #{tpu_custom_call.1} parent=1 // pred_region
      %24 = vsyncadd [#allocation3], 0
      %s26 = sshll.u32 %s0, 4
      %s27 = int_to_ptr.hbm [resolvable:$true] %s26
      %s28 = sshll.u32 [#allocation2], 4
      %s29 = int_to_ptr.vmem [resolvable:$true] %s28
      %31 = dma.hbm_to_vmem [thread:$0]  %s27, 128, %s29, [#allocation3]
    $region5: #{tpu_custom_call.1} parent=1 // pred_fallthru
      _
    // Predicated region
    $region6: #{tpu_custom_call.1} parent=1 // pred_check
      _
    $region7: #{tpu_custom_call.1} parent=1 // pred_check_branch
      %33 = sbr.rel (0) target = $region9
    $region8: #{tpu_custom_call.1} parent=1 // pred_region
      %35 = vsyncadd [#allocation6], 0
      %s36 = sshll.u32 %s1, 4
      %s37 = int_to_ptr.hbm [resolvable:$true] %s36
      %s38 = sshll.u32 [#allocation5], 4
      %s39 = int_to_ptr.vmem [resolvable:$true] %s38
      %44 = dma.hbm_to_vmem [thread:$0]  %s37, 2048, %s39, [#allocation6], 128, 128, 8
    $region9: #{tpu_custom_call.1} parent=1 // pred_fallthru
      _
    // Predicated region
    $region10: #{tpu_custom_call.1} parent=1 // pred_check
      _
    $region11: #{tpu_custom_call.1} parent=1 // pred_check_branch
      %46 = sbr.rel (0) target = $region13
    $region12: #{tpu_custom_call.1} parent=1 // pred_region
      _
    $region13: #{tpu_custom_call.1} parent=1 // pred_fallthru
      _
    // Predicated region
    $region14: #{tpu_custom_call.1} parent=1 // pred_check
      _
    $region15: #{tpu_custom_call.1} parent=1 // pred_check_branch
      %48 = sbr.rel (0) target = $region17
    $region16: #{tpu_custom_call.1} parent=1 // pred_region
      %50 = vsyncadd [#allocation6], 0
      %s51 = sshll.u32 %s3, 4
      %s52 = int_to_ptr.hbm [resolvable:$true] %s51
      %s53 = sshll.u32 [#allocation7], 4
      %s54 = int_to_ptr.vmem [resolvable:$true] %s53
      %59 = dma.hbm_to_vmem [thread:$0]  %s52, 2048, %s54, [#allocation6], 128, 128, 8
    $region17: #{tpu_custom_call.1} parent=1 // pred_fallthru
      _
    // Predicated region
    $region18: #{tpu_custom_call.1} parent=1 // pred_check
      _
    $region19: #{tpu_custom_call.1} parent=1 // pred_check_branch
      %61 = sbr.rel (0) target = $region21
    $region20: #{tpu_custom_call.1} parent=1 // pred_region
      _
    $region21: #{tpu_custom_call.1} parent=1 // pred_fallthru
      _
    // Predicated region
    $region22: #{tpu_custom_call.1} parent=1 // pred_check
      _
    $region23: #{tpu_custom_call.1} parent=1 // pred_check_branch
      %63 = sbr.rel (0) target = $region25
    $region24: #{tpu_custom_call.1} parent=1 // pred_region
      %65 = vsyncadd [#allocation9], 0
      %s66 = sshll.u32 %s5, 4
      %s67 = int_to_ptr.hbm [resolvable:$true] %s66
      %s68 = sshll.u32 [#allocation8], 4
      %s69 = int_to_ptr.vmem [resolvable:$true] %s68
      %74 = dma.hbm_to_vmem [thread:$0]  %s67, 2048, %s69, [#allocation9], 128, 128, 8
    $region25: #{tpu_custom_call.1} parent=1 // pred_fallthru
      _
    // Predicated region
    $region26: #{tpu_custom_call.1} parent=1 // pred_check
      _
    $region27: #{tpu_custom_call.1} parent=1 // pred_check_branch
      %76 = sbr.rel (0) target = $region29
    $region28: #{tpu_custom_call.1} parent=1 // pred_region
      _
    $region29: #{tpu_custom_call.1} parent=1 // pred_fallthru
      _
    // Predicated region
    $region30: #{tpu_custom_call.1} parent=1 // pred_check
      _
    $region31: #{tpu_custom_call.1} parent=1 // pred_check_branch
      %78 = sbr.rel (0) target = $region33
    $region32: #{tpu_custom_call.1} parent=1 // pred_region
      %80 = vsyncadd [#allocation9], 0
      %s81 = sshll.u32 %s7, 4
      %s82 = int_to_ptr.hbm [resolvable:$true] %s81
      %s83 = sshll.u32 [#allocation10], 4
      %s84 = int_to_ptr.vmem [resolvable:$true] %s83
      %89 = dma.hbm_to_vmem [thread:$0]  %s82, 2048, %s84, [#allocation9], 128, 128, 8
    $region33: #{tpu_custom_call.1} parent=1 // pred_fallthru
      _
    // Predicated region
    $region34: #{tpu_custom_call.1} parent=1 // pred_check
      _
    $region35: #{tpu_custom_call.1} parent=1 // pred_check_branch
      %91 = sbr.rel (0) target = $region37
    $region36: #{tpu_custom_call.1} parent=1 // pred_region
      _
    $region37: #{tpu_custom_call.1} parent=1 // pred_fallthru
      _
    // Predicated region
    $region38: #{tpu_custom_call.1} parent=1 // pred_check
      _
    $region39: #{tpu_custom_call.1} parent=1 // pred_check_branch
      %93 = sbr.rel (0) target = $region41
    $region40: #{tpu_custom_call.1} parent=1 // pred_region
      %95 = dma.done [#allocation3], 128
    $region41: #{tpu_custom_call.1} parent=1 // pred_fallthru
      _
    // Predicated region
    $region42: #{tpu_custom_call.1} parent=1 // pred_check
      _
    $region43: #{tpu_custom_call.1} parent=1 // pred_check_branch
      %97 = sbr.rel (0) target = $region45
    $region44: #{tpu_custom_call.1} parent=1 // pred_region
      %99 = dma.done [#allocation6], 2048
    $region45: #{tpu_custom_call.1} parent=1 // pred_fallthru
      _
    // Predicated region
    $region46: #{tpu_custom_call.1} parent=1 // pred_check
      _
    $region47: #{tpu_custom_call.1} parent=1 // pred_check_branch
      %101 = sbr.rel (0) target = $region49
    $region48: #{tpu_custom_call.1} parent=1 // pred_region
      %103 = dma.done [#allocation6], 2048
    $region49: #{tpu_custom_call.1} parent=1 // pred_fallthru
      _
    // Predicated region
    $region50: #{tpu_custom_call.1} parent=1 // pred_check
      _
    $region51: #{tpu_custom_call.1} parent=1 // pred_check_branch
      %105 = sbr.rel (0) target = $region53
    $region52: #{tpu_custom_call.1} parent=1 // pred_region
      %107 = dma.done [#allocation9], 2048
    $region53: #{tpu_custom_call.1} parent=1 // pred_fallthru
      _
    // Predicated region
    $region54: #{tpu_custom_call.1} parent=1 // pred_check
      _
    $region55: #{tpu_custom_call.1} parent=1 // pred_check_branch
      %109 = sbr.rel (0) target = $region57
    $region56: #{tpu_custom_call.1} parent=1 // pred_region
      %111 = dma.done [#allocation9], 2048
    $region57: #{tpu_custom_call.1} parent=1 // pred_fallthru
      _
    %v112 = vld [vmem:[#allocation2] sm:$0xff]
    %v113 = vld [vmem:[#allocation5] sm:$0xff]
    %v114 = vld [vmem:[#allocation5 + $0x8] sm:$0xff]
    %v115 = vld [vmem:[#allocation5 + $0x10] sm:$0xff]
    %v116 = vld [vmem:[#allocation5 + $0x18] sm:$0xff]
    %v117 = vld [vmem:[#allocation5 + $0x20] sm:$0xff]
    %v118 = vld [vmem:[#allocation5 + $0x28] sm:$0xff]
    %v119 = vld [vmem:[#allocation5 + $0x30] sm:$0xff]
    %v120 = vld [vmem:[#allocation5 + $0x38] sm:$0xff]
    %v121 = vld [vmem:[#allocation5 + $0x40] sm:$0xff]
    %v122 = vld [vmem:[#allocation5 + $0x48] sm:$0xff]
    %v123 = vld [vmem:[#allocation5 + $0x50] sm:$0xff]
    %v124 = vld [vmem:[#allocation5 + $0x58] sm:$0xff]
    %v125 = vld [vmem:[#allocation5 + $0x60] sm:$0xff]
    %v126 = vld [vmem:[#allocation5 + $0x68] sm:$0xff]
    %v127 = vld [vmem:[#allocation5 + $0x70] sm:$0xff]
    %v128 = vld [vmem:[#allocation5 + $0x78] sm:$0xff]
    %v129 = vld [vmem:[%s2] sm:$0x1]
    %v131 = vperm.slane %v129, 0
    %133 = vmatpush.msra.mxu0 %v128
    %134 = vmatpush.msra.mxu0 %v127
    %135 = vmatpush.msra.mxu0 %v126
    %136 = vmatpush.msra.mxu0 %v125
    %137 = vmatpush.msra.mxu0 %v124
    %138 = vmatpush.msra.mxu0 %v123
    %139 = vmatpush.msra.mxu0 %v122
    %140 = vmatpush.msra.mxu0 %v121
    %141 = vmatpush.msra.mxu0 %v120
    %142 = vmatpush.msra.mxu0 %v119
    %143 = vmatpush.msra.mxu0 %v118
    %144 = vmatpush.msra.mxu0 %v117
    %145 = vmatpush.msra.mxu0 %v116
    %146 = vmatpush.msra.mxu0 %v115
    %147 = vmatpush.msra.mxu0 %v114
    %148 = vmatpush.msra.mxu0 %v113
    %149 = vmatmul.f32.gmra.mxu0 %v112
    %v150 = vpop.f32.mrf.mxu0
    %v151 = vadd.f32 %v131, %v150
    %152 = vdwg.mxu0
    %v153 = vmax.f32 %v151, 0.0
    %v154 = vld [vmem:[#allocation7] sm:$0xff]
    %v155 = vld [vmem:[#allocation7 + $0x8] sm:$0xff]
    %v156 = vld [vmem:[#allocation7 + $0x10] sm:$0xff]
    %v157 = vld [vmem:[#allocation7 + $0x18] sm:$0xff]
    %v158 = vld [vmem:[#allocation7 + $0x20] sm:$0xff]
    %v159 = vld [vmem:[#allocation7 + $0x28] sm:$0xff]
    %v160 = vld [vmem:[#allocation7 + $0x30] sm:$0xff]
    %v161 = vld [vmem:[#allocation7 + $0x38] sm:$0xff]
    %v162 = vld [vmem:[#allocation7 + $0x40] sm:$0xff]
    %v163 = vld [vmem:[#allocation7 + $0x48] sm:$0xff]
    %v164 = vld [vmem:[#allocation7 + $0x50] sm:$0xff]
    %v165 = vld [vmem:[#allocation7 + $0x58] sm:$0xff]
    %v166 = vld [vmem:[#allocation7 + $0x60] sm:$0xff]
    %v167 = vld [vmem:[#allocation7 + $0x68] sm:$0xff]
    %v168 = vld [vmem:[#allocation7 + $0x70] sm:$0xff]
    %v169 = vld [vmem:[#allocation7 + $0x78] sm:$0xff]
    %v170 = vld [vmem:[%s4] sm:$0x1]
    %v172 = vperm.slane %v170, 0
    %174 = vmatpush.msra.mxu0 %v169
    %175 = vmatpush.msra.mxu0 %v168
    %176 = vmatpush.msra.mxu0 %v167
    %177 = vmatpush.msra.mxu0 %v166
    %178 = vmatpush.msra.mxu0 %v165
    %179 = vmatpush.msra.mxu0 %v164
    %180 = vmatpush.msra.mxu0 %v163
    %181 = vmatpush.msra.mxu0 %v162
    %182 = vmatpush.msra.mxu0 %v161
    %183 = vmatpush.msra.mxu0 %v160
    %184 = vmatpush.msra.mxu0 %v159
    %185 = vmatpush.msra.mxu0 %v158
    %186 = vmatpush.msra.mxu0 %v157
    %187 = vmatpush.msra.mxu0 %v156
    %188 = vmatpush.msra.mxu0 %v155
    %189 = vmatpush.msra.mxu0 %v154
    %190 = vmatmul.f32.gmra.mxu0 %v153
    %v191 = vpop.f32.mrf.mxu0
    %v192 = vadd.f32 %v172, %v191
    %193 = vdwg.mxu0
    %194 = vst [vmem:[#allocation11] sm:$0xff] %v192
    %v195 = vld [vmem:[#allocation8] sm:$0xff]
    %v196 = vld [vmem:[#allocation8 + $0x8] sm:$0xff]
    %v197 = vld [vmem:[#allocation8 + $0x10] sm:$0xff]
    %v198 = vld [vmem:[#allocation8 + $0x18] sm:$0xff]
    %v199 = vld [vmem:[#allocation8 + $0x20] sm:$0xff]
    %v200 = vld [vmem:[#allocation8 + $0x28] sm:$0xff]
    %v201 = vld [vmem:[#allocation8 + $0x30] sm:$0xff]
    %v202 = vld [vmem:[#allocation8 + $0x38] sm:$0xff]
    %v203 = vld [vmem:[#allocation8 + $0x40] sm:$0xff]
    %v204 = vld [vmem:[#allocation8 + $0x48] sm:$0xff]
    %v205 = vld [vmem:[#allocation8 + $0x50] sm:$0xff]
    %v206 = vld [vmem:[#allocation8 + $0x58] sm:$0xff]
    %v207 = vld [vmem:[#allocation8 + $0x60] sm:$0xff]
    %v208 = vld [vmem:[#allocation8 + $0x68] sm:$0xff]
    %v209 = vld [vmem:[#allocation8 + $0x70] sm:$0xff]
    %v210 = vld [vmem:[#allocation8 + $0x78] sm:$0xff]
    %v211 = vld [vmem:[%s6] sm:$0x1]
    %v213 = vperm.slane %v211, 0
    %215 = vmatpush.msra.mxu0 %v210
    %216 = vmatpush.msra.mxu0 %v209
    %217 = vmatpush.msra.mxu0 %v208
    %218 = vmatpush.msra.mxu0 %v207
    %219 = vmatpush.msra.mxu0 %v206
    %220 = vmatpush.msra.mxu0 %v205
    %221 = vmatpush.msra.mxu0 %v204
    %222 = vmatpush.msra.mxu0 %v203
    %223 = vmatpush.msra.mxu0 %v202
    %224 = vmatpush.msra.mxu0 %v201
    %225 = vmatpush.msra.mxu0 %v200
    %226 = vmatpush.msra.mxu0 %v199
    %227 = vmatpush.msra.mxu0 %v198
    %228 = vmatpush.msra.mxu0 %v197
    %229 = vmatpush.msra.mxu0 %v196
    %230 = vmatpush.msra.mxu0 %v195
    %231 = vmatmul.f32.gmra.mxu0 %v192
    %v232 = vpop.f32.mrf.mxu0
    %v233 = vadd.f32 %v213, %v232
    %234 = vdwg.mxu0
    %v235 = vmax.f32 %v233, 0.0
    %v236 = vld [vmem:[#allocation10] sm:$0xff]
    %v237 = vld [vmem:[#allocation10 + $0x8] sm:$0xff]
    %v238 = vld [vmem:[#allocation10 + $0x10] sm:$0xff]
    %v239 = vld [vmem:[#allocation10 + $0x18] sm:$0xff]
    %v240 = vld [vmem:[#allocation10 + $0x20] sm:$0xff]
    %v241 = vld [vmem:[#allocation10 + $0x28] sm:$0xff]
    %v242 = vld [vmem:[#allocation10 + $0x30] sm:$0xff]
    %v243 = vld [vmem:[#allocation10 + $0x38] sm:$0xff]
    %v244 = vld [vmem:[#allocation10 + $0x40] sm:$0xff]
    %v245 = vld [vmem:[#allocation10 + $0x48] sm:$0xff]
    %v246 = vld [vmem:[#allocation10 + $0x50] sm:$0xff]
    %v247 = vld [vmem:[#allocation10 + $0x58] sm:$0xff]
    %v248 = vld [vmem:[#allocation10 + $0x60] sm:$0xff]
    %v249 = vld [vmem:[#allocation10 + $0x68] sm:$0xff]
    %v250 = vld [vmem:[#allocation10 + $0x70] sm:$0xff]
    %v251 = vld [vmem:[#allocation10 + $0x78] sm:$0xff]
    %v252 = vld [vmem:[%s8] sm:$0x1]
    %v254 = vperm.slane %v252, 0
    %256 = vmatpush.msra.mxu0 %v251
    %257 = vmatpush.msra.mxu0 %v250
    %258 = vmatpush.msra.mxu0 %v249
    %259 = vmatpush.msra.mxu0 %v248
    %260 = vmatpush.msra.mxu0 %v247
    %261 = vmatpush.msra.mxu0 %v246
    %262 = vmatpush.msra.mxu0 %v245
    %263 = vmatpush.msra.mxu0 %v244
    %264 = vmatpush.msra.mxu0 %v243
    %265 = vmatpush.msra.mxu0 %v242
    %266 = vmatpush.msra.mxu0 %v241
    %267 = vmatpush.msra.mxu0 %v240
    %268 = vmatpush.msra.mxu0 %v239
    %269 = vmatpush.msra.mxu0 %v238
    %270 = vmatpush.msra.mxu0 %v237
    %271 = vmatpush.msra.mxu0 %v236
    %272 = vmatmul.f32.gmra.mxu0 %v235
    %v273 = vpop.f32.mrf.mxu0
    %v274 = vadd.f32 %v254, %v273
    %275 = vdwg.mxu0
    %v276 = vlaneseq
    %v277 = vand.u32 %v276, 127
    %v278 = vmul.f32 %v274, 1.442695
    %v279 = vpow.pop %v278
    %v280 = vmax.f32 %v279, 1e-05
    %v281 = vmin.f32 %v280, 1000000.0
    %v282 = vmax.f32 %v274, 0.0
    %vm283 = vcmp.ne.f32.partialorder %v274, %v274
    %v284 = vadd.f32 %v274, 0.0
    %v285 = vand.u32 2147483647, %v274
    %v286 = vsub.f32 0.0, %v285
    %v287 = vmul.f32 %v286, 1.442695
    %v288 = vpow.pop %v287
    %v289 = vadd.f32 %v288, 1.0
    %v290 = vlog2.pop %v289
    %v291 = vmul.f32 %v290, 0.6931472
    %v292 = vmul.f32 -0.5, %v288
    %v293 = vadd.f32 %v292, 1.0
    %v294 = vmul.f32 %v293, %v288
    %v295 = vand.u32 2147483647, %v288
    %vm296 = vcmp.lt.f32.partialorder %v295, 0.0004427343
    %v297 = vsel %vm296, %v294, %v291
    %v298 = vadd.f32 %v282, %v297
    %v299 = vsel %vm283, %v284, %v298
    %v300 = vmax.f32 %v299, 0.0001
    %v301 = vmin.f32 %v300, 10000.0
    %v302 = vxor.u32 %v274, 2147483648
    %v303 = vmul.f32 %v302, 1.442695
    %v304 = vpow.pop %v303
    %v305 = vadd.f32 %v304, 1.0
    %v306 = vrcp.pop %v305
    %v307 = vmul.f32 %v305, %v306
    %v308 = vsub.f32 1.0, %v307
    %v309 = vmul.f32 %v306, %v308
    %v310 = vadd.f32 %v306, %v309
    %vm311 = vweird.f32 %v305
    %vm312 = vweird.f32 %v306
    %vm313 = vmor %vm311, %vm312
    %v314 = vsel %vm313, %v306, %v310
    %v315 = vand.u32 2147483647, %v305
    %vm316 = vcmp.eq.f32.partialorder %v315, 8.507059e+37
    %v317 = vand.u32 %v305, 2147483648
    %v318 = vor.u32 1.1754944e-38, %v317
    %v319 = vsel %vm316, %v318, %v314
    %v320 = vmul.f32 1.0, %v319
    %vm321 = vcmp.lt.s32.totalorder %v277, 32
    %vm322 = vcmp.lt.s32.totalorder %v277, 64
    %v323 = vsel %vm322, %v301, %v320
    %v324 = vsel %vm321, %v281, %v323
    %325 = vst [vmem:[#allocation12] sm:$0xff] %v324
    // Predicated region
    $region58: #{tpu_custom_call.1} parent=1 // pred_check
      _
    $region59: #{tpu_custom_call.1} parent=1 // pred_check_branch
      %327 = sbr.rel (0) target = $region61
    $region60: #{tpu_custom_call.1} parent=1 // pred_region
      %329 = vsyncadd [#allocation4], 0
      %s331 = sshll.u32 [#allocation11], 4
      %s332 = int_to_ptr.vmem [resolvable:$true] %s331
      %s333 = sshll.u32 %s9, 4
      %s334 = int_to_ptr.hbm [resolvable:$true] %s333
      %336 = dma.vmem_to_hbm [thread:$0]  %s332, 128, %s334, [#allocation4]
    $region61: #{tpu_custom_call.1} parent=1 // pred_fallthru
      _
    // Predicated region
    $region62: #{tpu_custom_call.1} parent=1 // pred_check
      _
    $region63: #{tpu_custom_call.1} parent=1 // pred_check_branch
      %338 = sbr.rel (0) target = $region65
    $region64: #{tpu_custom_call.1} parent=1 // pred_region
      %340 = vsyncadd [#allocation13], 0
      %s342 = sshll.u32 [#allocation12], 4
      %s343 = int_to_ptr.vmem [resolvable:$true] %s342
      %s344 = sshll.u32 %s10, 4
      %s345 = int_to_ptr.hbm [resolvable:$true] %s344
      %347 = dma.vmem_to_hbm [thread:$0]  %s343, 128, %s345, [#allocation13]
    $region65: #{tpu_custom_call.1} parent=1 // pred_fallthru
      _
    // Predicated region
    $region66: #{tpu_custom_call.1} parent=1 // pred_check
      _
    $region67: #{tpu_custom_call.1} parent=1 // pred_check_branch
      %349 = sbr.rel (0) target = $region69
    $region68: #{tpu_custom_call.1} parent=1 // pred_region
      %351 = dma.done [#allocation4], 128
    $region69: #{tpu_custom_call.1} parent=1 // pred_fallthru
      _
    // Predicated region
    $region70: #{tpu_custom_call.1} parent=1 // pred_check
      _
    $region71: #{tpu_custom_call.1} parent=1 // pred_check_branch
      %353 = sbr.rel (0) target = $region73
    $region72: #{tpu_custom_call.1} parent=1 // pred_region
      %355 = dma.done [#allocation13], 128
    $region73: #{tpu_custom_call.1} parent=1 // pred_fallthru
      _
    %356 = vsyncpa [#allocation3], 1
    %357 = vsyncpa [#allocation6], 1
    %358 = vsyncpa [#allocation9], 1
    %359 = vsyncpa [#allocation4], 1
    %360 = vsyncpa [#allocation13], 1

</llo_original>
